<compile_context>
chip_gen: v7x
topology: tpu7x:2x2x1
jax: 0.10.0
libtpu: 0.0.40
codegen_flags: <defaults>
</compile_context>

<pallas_src>
import functools
import math

import jax
import jax.numpy as jnp
from jax.experimental import pallas as pl
from jax.experimental.pallas import tpu as pltpu


def _gelu_tanh(x):
    # gelu_pytorch_tanh: 0.5*x*(1 + tanh(sqrt(2/pi)*(x + 0.044715*x^3)))
    c = math.sqrt(2.0 / math.pi)
    return 0.5 * x * (1.0 + jnp.tanh(c * (x + 0.044715 * x * x * x)))


def gemma_mlp_kernel(x_ref, wgu_ref, wd_ref, o_ref, acc_ref, *, ti):
    j = pl.program_id(1)

    x = x_ref[...]  # [tm, H]

    # Fused gate|up projection: [tm, H] @ [H, 2*ti] -> [tm, 2*ti]  (NN, f32 acc)
    gu = jnp.dot(x, wgu_ref[...], preferred_element_type=jnp.float32)
    g = gu[:, :ti]
    u = gu[:, ti:]
    h = _gelu_tanh(g) * u  # [tm, ti] f32

    # Partial down projection: [tm, ti] @ [ti, H] -> [tm, H]  (NN, f32 acc).
    # h is cast to the weight dtype (bf16 weights => bf16 MXU operand);
    # accumulation stays f32.
    partial = jnp.dot(h.astype(wd_ref.dtype), wd_ref[...],
                      preferred_element_type=jnp.float32)

    @pl.when(j == 0)
    def _():
        # First-product init: avoids a full (tm, H) f32 zero store + read-add.
        acc_ref[...] = partial

    @pl.when(j > 0)
    def _():
        acc_ref[...] += partial

    @pl.when(j == pl.num_programs(1) - 1)
    def _():
        o_ref[...] = acc_ref[...].astype(o_ref.dtype)


def pack_gemma_mlp_weights(w_gate, w_up, w_down, ti):
    """One-time weight prep (hoist / fold under jit for repeated calls).

    Returns:
      w_gu_t   : [H, 2*I] — per ti-block interleaved [gate_tile | up_tile],
                  transposed for NN matmuls.
      w_down_t : [I, H]   — transposed for NN matmuls.
    """
    I, H = w_gate.shape
    n_j = I // ti
    wg = w_gate.reshape(n_j, ti, H)
    wu = w_up.reshape(n_j, ti, H)
    w_gu_t = jnp.concatenate([wg, wu], axis=1).reshape(2 * I, H).T  # [H, 2I]
    w_down_t = w_down.T                                             # [I, H]
    return w_gu_t, w_down_t


def _physical_vmem_bytes():
    try:
        cap = getattr(pltpu.get_tpu_info(), "vmem_capacity_bytes", None)
        if cap:
            return int(cap)
    except Exception:
        pass
    return 64 << 20  # conservative fallback (v7x per-TC VMEM)


def _working_set_bytes(tm, ti, H, db, weight_buffers):
    return (2 * tm * H * db                        # x tile (double-buffered)
            + weight_buffers * 2 * ti * H * db     # fused gate|up weight tile
            + weight_buffers * ti * H * db         # down weight tile
            + 2 * tm * H * db                      # output tile (double-buffered)
            + tm * H * 4)                          # f32 accumulator scratch


def gemma_mlp(x, w_gate, w_up, w_down, *, tm=None, ti=None, vmem_limit_bytes=None):
    """Fused Gemma MLP.

    x:       [B, S, H]
    w_gate:  [I, H]   (PyTorch nn.Linear layout)
    w_up:    [I, H]
    w_down:  [H, I]
    """
    B, S, H = x.shape
    I, Hw = w_gate.shape
    assert Hw == H and w_up.shape == (I, H) and w_down.shape == (H, I)
    M = B * S
    db = jnp.dtype(x.dtype).itemsize

    phys_vmem = _physical_vmem_bytes()
    budget = int(phys_vmem * 0.75)  # headroom for Mosaic-internal scratch

    # ---- intermediate-dim tile: smaller preference on small-VMEM parts (v7x)
    if ti is None:
        prefer = (512, 384, 256, 128) if phys_vmem >= (96 << 20) else (256, 128, 512, 384)
        ti = I
        for cand in prefer:
            if I % cand == 0:
                ti = cand
                break
    ti = min(ti, I)
    assert I % ti == 0, f"I={I} must be divisible by ti={ti}"

    # ---- row tile: the arithmetic-intensity knob.  Pick the largest tile
    # (up to 2048) that divides M, respects the (8,128) block rule, and fits
    # the VMEM budget; falls back to the smallest candidate otherwise.
    if tm is None:
        cands = sorted(
            {c for c in (2048, 1536, 1024, 768, 512, 384, 256, 128, 64, 32, 16, 8, M)
             if c <= M and M % c == 0 and (c % 8 == 0 or c == M)},
            reverse=True)
        tm = cands[-1] if cands else M
        for c in cands:
            if _working_set_bytes(c, ti, H, db, 2) <= budget:
                tm = c
                break
    tm = min(tm, M)
    assert M % tm == 0, f"M={M} must be divisible by tm={tm}"

    grid_m = M // tm
    grid_j = I // ti

    # Decode / small-M path: a single i-step is pure weight streaming, so
    # triple-buffer the weight streams to hide DMA latency between j-steps.
    weight_buffers = 3 if (grid_m == 1 and grid_j >= 3) else 2

    working = _working_set_bytes(tm, ti, H, db, weight_buffers)
    if vmem_limit_bytes is None:
        vmem_limit_bytes = max(int(working * 1.25) + (4 << 20), 32 << 20)
    # Never request more than physical VMEM (portability fix for v7x).
    vmem_limit_bytes = int(min(vmem_limit_bytes, int(phys_vmem * 0.9)))

    x2d = x.reshape(M, H)
    w_gu_t, w_down_t = pack_gemma_mlp_weights(w_gate, w_up, w_down, ti)

    wspec_kwargs = {}
    if weight_buffers != 2:
        wspec_kwargs = dict(pipeline_mode=pl.Buffered(weight_buffers))

    in_specs = [
        pl.BlockSpec((tm, H), lambda i, j: (i, 0)),                      # x rows
        pl.BlockSpec((H, 2 * ti), lambda i, j: (0, j), **wspec_kwargs),  # [gate|up]
        pl.BlockSpec((ti, H), lambda i, j: (j, 0), **wspec_kwargs),      # down tile
    ]

    cost = pl.CostEstimate(
        flops=6 * M * I * H,                                   # 3 matmuls
        transcendentals=M * I,                                 # tanh per gate elem
        bytes_accessed=(2 * M * H + 3 * I * H * grid_m) * db,  # x + out + weight re-stream
    )

    out = pl.pallas_call(
        functools.partial(gemma_mlp_kernel, ti=ti),
        out_shape=jax.ShapeDtypeStruct((M, H), x.dtype),
        grid_spec=pltpu.PrefetchScalarGridSpec(
            num_scalar_prefetch=0,
            grid=(grid_m, grid_j),
            in_specs=in_specs,
            out_specs=pl.BlockSpec((tm, H), lambda i, j: (i, 0)),
            scratch_shapes=[pltpu.VMEM((tm, H), jnp.float32)],
        ),
        compiler_params=pltpu.CompilerParams(
            dimension_semantics=("parallel", "arbitrary"),
            vmem_limit_bytes=vmem_limit_bytes,
        ),
        cost_estimate=cost,
    )(x2d, w_gu_t, w_down_t)

    return out.reshape(B, S, H)


def gemma_mlp_ref(x, w_gate, w_up, w_down):
    g = jnp.einsum("bsh,ih->bsi", x, w_gate, preferred_element_type=jnp.float32)
    u = jnp.einsum("bsh,ih->bsi", x, w_up, preferred_element_type=jnp.float32)
    h = _gelu_tanh(g) * u
    out = jnp.einsum("bsi,hi->bsh", h.astype(w_down.dtype), w_down,
                     preferred_element_type=jnp.float32)
    return out.astype(x.dtype)


if __name__ == "__main__":
    key = jax.random.PRNGKey(0)

    # ---- Test 1: f32, exercises multiple i-steps AND j-steps ----------------
    B, S, H, I = 2, 8, 128, 256
    kx, kg, ku, kd, key = jax.random.split(key, 5)
    x = jax.random.normal(kx, (B, S, H), dtype=jnp.float32)
    # PyTorch nn.Linear weight shapes: [out_features, in_features]
    w_gate = jax.random.normal(kg, (I, H), dtype=jnp.float32) * (1.0 / math.sqrt(H))
    w_up = jax.random.normal(ku, (I, H), dtype=jnp.float32) * (1.0 / math.sqrt(H))
    w_down = jax.random.normal(kd, (H, I), dtype=jnp.float32) * (1.0 / math.sqrt(I))

    out = jax.block_until_ready(gemma_mlp(x, w_gate, w_up, w_down, tm=8, ti=128))
    ref = gemma_mlp_ref(x, w_gate, w_up, w_down)
    assert out.shape == (B, S, H)
    assert jnp.allclose(out, ref, atol=2e-4, rtol=2e-4), \
        float(jnp.max(jnp.abs(out - ref)))

    # ---- Test 2: bf16, decode-like path (single i-step, Buffered(3) weights)
    B2, S2, H2, I2 = 1, 4, 256, 512
    kx, kg, ku, kd, key = jax.random.split(key, 5)
    x2 = jax.random.normal(kx, (B2, S2, H2), dtype=jnp.bfloat16)
    wg2 = (jax.random.normal(kg, (I2, H2), jnp.float32) / math.sqrt(H2)).astype(jnp.bfloat16)
    wu2 = (jax.random.normal(ku, (I2, H2), jnp.float32) / math.sqrt(H2)).astype(jnp.bfloat16)
    wd2 = (jax.random.normal(kd, (H2, I2), jnp.float32) / math.sqrt(I2)).astype(jnp.bfloat16)

    out2 = jax.block_until_ready(gemma_mlp(x2, wg2, wu2, wd2, ti=128))
    ref2 = gemma_mlp_ref(x2, wg2, wu2, wd2)
    assert out2.shape == (B2, S2, H2)
    d = jnp.abs(out2.astype(jnp.float32) - ref2.astype(jnp.float32))
    assert jnp.allclose(out2.astype(jnp.float32), ref2.astype(jnp.float32),
                        atol=3e-2, rtol=3e-2), float(jnp.max(d))

    print("KERNEL_OK")
</pallas_src>

<mosaic_0001>
module attributes {stable_mosaic.version = 11 : i64} {
  func.func @gemma_mlp_kernel(%arg0: i32, %arg1: i32, %arg2: memref<8x128xf32, #tpu.memory_space<vmem>>, %arg3: memref<128x256xf32, #tpu.memory_space<vmem>>, %arg4: memref<128x128xf32, #tpu.memory_space<vmem>>, %arg5: memref<8x128xf32, #tpu.memory_space<vmem>>, %arg6: memref<8x128xf32, #tpu.memory_space<vmem>>) attributes {dimension_semantics = [#tpu.dimension_semantics<parallel>, #tpu.dimension_semantics<arbitrary>], iteration_bounds = array<i64: 2, 2>, scalar_prefetch = 0 : i64, scratch_operands = 1 : i64, tpu.core_type = #tpu.core_type<tc>, window_params = [{transform_indices = @transform_0, window_bounds = array<i64: 8, 128>}, {transform_indices = @transform_1, window_bounds = array<i64: 128, 256>}, {transform_indices = @transform_2, window_bounds = array<i64: 128, 128>}, {transform_indices = @transform_3, window_bounds = array<i64: 8, 128>}]} {
    %c0 = arith.constant 0 : index
    %c0_0 = arith.constant 0 : index
    %0 = vector.load %arg2[%c0, %c0_0] : memref<8x128xf32, #tpu.memory_space<vmem>>, vector<8x128xf32>
    %c0_1 = arith.constant 0 : index
    %c0_2 = arith.constant 0 : index
    %1 = vector.load %arg3[%c0_1, %c0_2] : memref<128x256xf32, #tpu.memory_space<vmem>>, vector<128x256xf32>
    %cst = arith.constant dense<0.000000e+00> : vector<8x256xf32>
    %2 = tpu.matmul %0, %1, %cst {dimension_numbers = #tpu.dot_dimension_numbers<[1], [0], [0], [1], [0, 0, 1, 1], [], []>} : vector<8x128xf32>, vector<128x256xf32>, vector<8x256xf32> -> vector<8x256xf32>
    %3 = vector.extract_strided_slice %2 {offsets = [0, 0], sizes = [8, 128], strides = [1, 1]} : vector<8x256xf32> to vector<8x128xf32>
    %4 = vector.extract_strided_slice %2 {offsets = [0, 128], sizes = [8, 128], strides = [1, 1]} : vector<8x256xf32> to vector<8x128xf32>
    %cst_3 = arith.constant 5.000000e-01 : f32
    %5 = vector.broadcast %cst_3 : f32 to vector<8x128xf32>
    %6 = arith.mulf %5, %3 : vector<8x128xf32>
    %cst_4 = arith.constant 4.471500e-02 : f32
    %7 = vector.broadcast %cst_4 : f32 to vector<8x128xf32>
    %8 = arith.mulf %7, %3 : vector<8x128xf32>
    %9 = arith.mulf %8, %3 : vector<8x128xf32>
    %10 = arith.mulf %9, %3 : vector<8x128xf32>
    %11 = arith.addf %3, %10 : vector<8x128xf32>
    %cst_5 = arith.constant 0.797884583 : f32
    %12 = vector.broadcast %cst_5 : f32 to vector<8x128xf32>
    %13 = arith.mulf %12, %11 : vector<8x128xf32>
    %14 = math.tanh %13 : vector<8x128xf32>
    %cst_6 = arith.constant 1.000000e+00 : f32
    %15 = vector.broadcast %cst_6 : f32 to vector<8x128xf32>
    %16 = arith.addf %15, %14 : vector<8x128xf32>
    %17 = arith.mulf %6, %16 : vector<8x128xf32>
    %18 = arith.mulf %17, %4 : vector<8x128xf32>
    %c0_7 = arith.constant 0 : index
    %c0_8 = arith.constant 0 : index
    %19 = vector.load %arg4[%c0_7, %c0_8] : memref<128x128xf32, #tpu.memory_space<vmem>>, vector<128x128xf32>
    %cst_9 = arith.constant dense<0.000000e+00> : vector<8x128xf32>
    %20 = tpu.matmul %18, %19, %cst_9 {dimension_numbers = #tpu.dot_dimension_numbers<[1], [0], [0], [1], [0, 0, 1, 1], [], []>} : vector<8x128xf32>, vector<128x128xf32>, vector<8x128xf32> -> vector<8x128xf32>
    %c0_i32 = arith.constant 0 : i32
    %21 = arith.cmpi eq, %arg1, %c0_i32 : i32
    %22 = arith.extui %21 : i1 to i32
    %c0_i32_10 = arith.constant 0 : i32
    %23 = arith.cmpi ne, %22, %c0_i32_10 : i32
    scf.if %23 {
      %c0_14 = arith.constant 0 : index
      %c0_15 = arith.constant 0 : index
      %30 = vector.load %arg6[%c0_14, %c0_15] : memref<8x128xf32, #tpu.memory_space<vmem>>, vector<8x128xf32>
      tpu.vector_store %arg6[%c0_14, %c0_15], %20 {strides = array<i32>} : memref<8x128xf32, #tpu.memory_space<vmem>>, vector<8x128xf32>,
    } else {
    }
    %c0_i32_11 = arith.constant 0 : i32
    %24 = arith.cmpi sgt, %arg1, %c0_i32_11 : i32
    %25 = arith.extui %24 : i1 to i32
    %c0_i32_12 = arith.constant 0 : i32
    %26 = arith.cmpi ne, %25, %c0_i32_12 : i32
    scf.if %26 {
      %c0_14 = arith.constant 0 : index
      %c0_15 = arith.constant 0 : index
      %30 = vector.load %arg6[%c0_14, %c0_15] : memref<8x128xf32, #tpu.memory_space<vmem>>, vector<8x128xf32>
      %31 = arith.addf %30, %20 : vector<8x128xf32>
      %c0_16 = arith.constant 0 : index
      %c0_17 = arith.constant 0 : index
      %32 = vector.load %arg6[%c0_16, %c0_17] : memref<8x128xf32, #tpu.memory_space<vmem>>, vector<8x128xf32>
      tpu.vector_store %arg6[%c0_16, %c0_17], %31 {strides = array<i32>} : memref<8x128xf32, #tpu.memory_space<vmem>>, vector<8x128xf32>,
    } else {
    }
    %c1_i32 = arith.constant 1 : i32
    %27 = arith.cmpi eq, %arg1, %c1_i32 : i32
    %28 = arith.extui %27 : i1 to i32
    %c0_i32_13 = arith.constant 0 : i32
    %29 = arith.cmpi ne, %28, %c0_i32_13 : i32
    scf.if %29 {
      %c0_14 = arith.constant 0 : index
      %c0_15 = arith.constant 0 : index
      %30 = vector.load %arg6[%c0_14, %c0_15] : memref<8x128xf32, #tpu.memory_space<vmem>>, vector<8x128xf32>
      %c0_16 = arith.constant 0 : index
      %c0_17 = arith.constant 0 : index
      %31 = vector.load %arg5[%c0_16, %c0_17] : memref<8x128xf32, #tpu.memory_space<vmem>>, vector<8x128xf32>
      tpu.vector_store %arg5[%c0_16, %c0_17], %30 {strides = array<i32>} : memref<8x128xf32, #tpu.memory_space<vmem>>, vector<8x128xf32>,
    } else {
    }
    return
  }
  func.func @transform_0(%arg0: i32, %arg1: i32) -> (i32, i32) {
    %c0_i32 = arith.constant 0 : i32
    %c0_i32_0 = arith.constant 0 : i32
    return %arg0, %c0_i32 : i32, i32
  }
  func.func @transform_1(%arg0: i32, %arg1: i32) -> (i32, i32) {
    %c0_i32 = arith.constant 0 : i32
    %c0_i32_0 = arith.constant 0 : i32
    return %c0_i32, %arg1 : i32, i32
  }
  func.func @transform_2(%arg0: i32, %arg1: i32) -> (i32, i32) {
    %c0_i32 = arith.constant 0 : i32
    %c0_i32_0 = arith.constant 0 : i32
    return %arg1, %c0_i32 : i32, i32
  }
  func.func @transform_3(%arg0: i32, %arg1: i32) -> (i32, i32) {
    %c0_i32 = arith.constant 0 : i32
    %c0_i32_0 = arith.constant 0 : i32
    return %arg0, %c0_i32 : i32, i32
  }
}

</mosaic_0001>

<llo_original>
// kernel: tpu_custom_call.1
$region0: #{tpu_custom_call.1}
  #allocation0 [shape = 'u32[]', space=smem, size = 0x4, offset = 0x4, fixed_abs, tag = 'smem constant byte address 0x4 - core index']
  #allocation1 [shape = 'u32[144,128]{1,0:T(1,128)}', space=vmem, size = 0x12000, scoped, tag = 'internal scratch']
  #allocation2 [shape = 'f32[8,128]{1,0:T(8,128)}', space=vmem, size = 0x1000, scoped, tag = 'scratch operand']
  %s0 = inlined_call_operand.hbm [shape: f32[16,128], index: 0, kind: input, shape index: {}]
  %s1 = inlined_call_operand.hbm [shape: f32[128,512], index: 1, kind: input, shape index: {}]
  %s2 = inlined_call_operand.hbm [shape: f32[256,128], index: 2, kind: input, shape index: {}]
  %s3 = inlined_call_operand.hbm [shape: f32[16,128], index: 3, kind: output, shape index: {}]
  %s4 = sld [smem:[#allocation0]]
  $region69: #{tpu_custom_call.1} parent=0
    _
  %s6 = ssub.s32 1, %s4
  %s7 = scalar_select 0, %s6, %s4
  $region1: #{tpu_custom_call.1} parent=0
    #allocation3 [shape = 'u8[8192]{0}', space=vmem, size = 0x2000, scoped, tag = 'input window, operand 0']
    #allocation4 [shape = 's32[2]{0}', space=sflag, size = 0x8, scoped, tag = 'scoped memory for tpu_custom_call.1']
    #allocation5 [shape = 's32[2]{0}', space=sflag, size = 0x8, scoped, tag = 'scoped memory for tpu_custom_call.1']
    #allocation6 [shape = 'u8[262144]{0}', space=vmem, size = 0x40000, scoped, tag = 'input window, operand 1']
    #allocation7 [shape = 's32[2]{0}', space=sflag, size = 0x8, scoped, tag = 'scoped memory for tpu_custom_call.1']
    #allocation8 [shape = 'u8[131072]{0}', space=vmem, size = 0x20000, scoped, tag = 'input window, operand 2']
    #allocation9 [shape = 'u8[8192]{0}', space=vmem, size = 0x2000, scoped, tag = 'output window, operand 0']
    %8 = vsyncpa [#allocation4], 0
    %s9 = scalar_lea.sflag [#allocation4], 1
    %10 = vsyncpa %s9, 0
    %11 = vsyncpa [#allocation7], 0
    %s12 = scalar_lea.sflag [#allocation7], 1
    %13 = vsyncpa %s12, 0
    %14 = vsyncpa [#allocation5], 0
    %s15 = scalar_lea.sflag [#allocation5], 1
    %16 = vsyncpa %s15, 0
    loop: start=0, step=1, limit=6
    $region2: #{tpu_custom_call.1} parent=1 // loop_pre_header
      _
    $region3: #{tpu_custom_call.1} parent=1 // loop_header
      %s18 = sphi 0, %s22
      %p19 = scmp.ge.s32.totalorder %s18, 6
      %s25 = sphi 0, %s37
      %s26 = sphi 0, %s33
      %s27 = sphi 0, %s25
      %s28 = sphi 0, %s26
      %s29 = sphi 0, %s27
      %s30 = sphi 0, %s28
      %s40 = sphi 0, %s42
      %s43 = sphi 0, %s40
      %s44 = sphi 0, %s43
      %s60 = sphi 0, %s44
      %s66 = sphi 0, %s68
      %s69 = sphi 0, %s66
      %s70 = sphi 0, %s69
      %s86 = sphi 0, %s70
      %s92 = sphi 0, %s94
      %s95 = sphi 0, %s92
      %s96 = sphi 0, %s95
      %s112 = sphi 0, %s96
      %s118 = sphi 0, %s120
      %s121 = sphi 0, %s118
      %s122 = sphi 0, %s121
      %s138 = sphi 0, %s122
    $region4: #{tpu_custom_call.1} parent=1 // loop_header_branch
      %21 = sbr.rel (%p19) target = $region8
    $region5: #{tpu_custom_call.1} parent=1 // loop_body
      %s23 = ssub.s32 %s18, 1
      %s24 = ssub.s32 %s18, 2
      %s31 = sadd.s32 1, %s26
      %p32 = scmp.ge.s32.totalorder %s31, 2
      %s33 = scalar_select %p32, 0, %s31
      %s34 = sadd.s32 1, %s25
      %s35 = scalar_select %p32, %s34, %s25
      %p36 = scmp.ge.s32.totalorder %s35, 2
      %s37 = scalar_select %p36, 0, %s35
      %s38 = ssub.s32 %s25, %s37
      %p39 = scmp.eq.s32.totalorder %s38, 0
      %s41 = sadd.s32 %s40, 1
      %s42 = scalar_select %p39, %s40, %s41
      %p45 = pneg %p39
      %p46 = scmp.eq.s32.totalorder %s18, 3
      %p47 = por %p45, %p46
      %p48 = scmp.ne.s32.totalorder %s40, %s43
      %p49 = scmp.eq.s32.totalorder %s18, 0
      %p50 = por %p48, %p49
      %p51 = scmp.ne.s32.totalorder %s40, %s43
      %p52 = scmp.eq.s32.totalorder %s23, 3
      %p53 = por %p51, %p52
      %p54 = scmp.ne.s32.totalorder %s43, %s44
      %p55 = scmp.eq.s32.totalorder %s23, 0
      %p56 = por %p54, %p55
      %p57 = scmp.ne.s32.totalorder %s43, %s44
      %p58 = scmp.eq.s32.totalorder %s24, 3
      %p59 = por %p57, %p58
      %p61 = scmp.ne.s32.totalorder %s44, %s60
      %p62 = scmp.eq.s32.totalorder %s24, 0
      %p63 = por %p61, %p62
      %s64 = ssub.s32 %s26, %s33
      %p65 = scmp.eq.s32.totalorder %s64, 0
      %s67 = sadd.s32 %s66, 1
      %s68 = scalar_select %p65, %s66, %s67
      %p71 = pneg %p65
      %p72 = scmp.eq.s32.totalorder %s18, 3
      %p73 = por %p71, %p72
      %p74 = scmp.ne.s32.totalorder %s66, %s69
      %p75 = scmp.eq.s32.totalorder %s18, 0
      %p76 = por %p74, %p75
      %p77 = scmp.ne.s32.totalorder %s66, %s69
      %p78 = scmp.eq.s32.totalorder %s23, 3
      %p79 = por %p77, %p78
      %p80 = scmp.ne.s32.totalorder %s69, %s70
      %p81 = scmp.eq.s32.totalorder %s23, 0
      %p82 = por %p80, %p81
      %p83 = scmp.ne.s32.totalorder %s69, %s70
      %p84 = scmp.eq.s32.totalorder %s24, 3
      %p85 = por %p83, %p84
      %p87 = scmp.ne.s32.totalorder %s70, %s86
      %p88 = scmp.eq.s32.totalorder %s24, 0
      %p89 = por %p87, %p88
      %s90 = ssub.s32 %s26, %s33
      %p91 = scmp.eq.s32.totalorder %s90, 0
      %s93 = sadd.s32 %s92, 1
      %s94 = scalar_select %p91, %s92, %s93
      %p97 = pneg %p91
      %p98 = scmp.eq.s32.totalorder %s18, 3
      %p99 = por %p97, %p98
      %p100 = scmp.ne.s32.totalorder %s92, %s95
      %p101 = scmp.eq.s32.totalorder %s18, 0
      %p102 = por %p100, %p101
      %p103 = scmp.ne.s32.totalorder %s92, %s95
      %p104 = scmp.eq.s32.totalorder %s23, 3
      %p105 = por %p103, %p104
      %p106 = scmp.ne.s32.totalorder %s95, %s96
      %p107 = scmp.eq.s32.totalorder %s23, 0
      %p108 = por %p106, %p107
      %p109 = scmp.ne.s32.totalorder %s95, %s96
      %p110 = scmp.eq.s32.totalorder %s24, 3
      %p111 = por %p109, %p110
      %p113 = scmp.ne.s32.totalorder %s96, %s112
      %p114 = scmp.eq.s32.totalorder %s24, 0
      %p115 = por %p113, %p114
      %s116 = ssub.s32 %s25, %s37
      %p117 = scmp.eq.s32.totalorder %s116, 0
      %s119 = sadd.s32 %s118, 1
      %s120 = scalar_select %p117, %s118, %s119
      %p123 = pneg %p117
      %p124 = scmp.eq.s32.totalorder %s18, 3
      %p125 = por %p123, %p124
      %p126 = scmp.ne.s32.totalorder %s118, %s121
      %p127 = scmp.eq.s32.totalorder %s18, 0
      %p128 = por %p126, %p127
      %p129 = scmp.ne.s32.totalorder %s118, %s121
      %p130 = scmp.eq.s32.totalorder %s23, 3
      %p131 = por %p129, %p130
      %p132 = scmp.ne.s32.totalorder %s121, %s122
      %p133 = scmp.eq.s32.totalorder %s23, 0
      %p134 = por %p132, %p133
      %p135 = scmp.ne.s32.totalorder %s121, %s122
      %p136 = scmp.eq.s32.totalorder %s24, 3
      %p137 = por %p135, %p136
      %p139 = scmp.ne.s32.totalorder %s122, %s138
      %p140 = scmp.eq.s32.totalorder %s24, 0
      %p141 = por %p139, %p140
      %p142 = scmp.le.s32.totalorder 1, %s18
      %p143 = scmp.lt.s32.totalorder %s18, 5
      %p144 = pnand %p142, %p143
      %p145 = pneg %p144
      // Predicated region
      $region9: #{tpu_custom_call.1} parent=5 // pred_check
        _
      $region10: #{tpu_custom_call.1} parent=5 // pred_check_branch
        %147 = sbr.rel (%p144) target = $region12
      $region11: #{tpu_custom_call.1} parent=5 // pred_region
        %s148 = ssub.s32 %s18, 1
      $region12: #{tpu_custom_call.1} parent=5 // pred_fallthru
        _
      %p149 = scmp.lt.s32.totalorder %s18, 4
      // Predicated region
      $region13: #{tpu_custom_call.1} parent=5 // pred_check
        %p150 = pneg %p149
      $region14: #{tpu_custom_call.1} parent=5 // pred_check_branch
        %152 = sbr.rel (%p150) target = $region16
      $region15: #{tpu_custom_call.1} parent=5 // pred_region
        // Predicated region
        $region17: #{tpu_custom_call.1} parent=15 // pred_check
          %p153 = pneg %p50
        $region18: #{tpu_custom_call.1} parent=15 // pred_check_branch
          %155 = sbr.rel (%p153) target = $region20
        $region19: #{tpu_custom_call.1} parent=15 // pred_region
          %s156 = sand.u32 %s40, 1
          %s157 = scalar_lea.sflag [#allocation4], %s156
          %s158 = sand.u32 %s40, 1
          %s159 = smul.addr %s158, 8
          %s160 = scalar_lea.vmem [#allocation3], %s159
          %s162 = ssub.s32 128, 128
          %163 = vsyncadd %s157, %s162
          %s164 = smul.addr %s25, 128
          %s165 = scalar_lea.hbm %s0, %s164
          %s167 = sshll.u32 %s160, 4
          %s168 = int_to_ptr.vmem [resolvable:$true] %s167
          %170 = dma.hbm_to_vmem [thread:$0]  %s165, 128, %s168, %s157
        $region20: #{tpu_custom_call.1} parent=15 // pred_fallthru
          _
        // Predicated region
        $region21: #{tpu_custom_call.1} parent=15 // pred_check
          %p171 = pneg %p76
        $region22: #{tpu_custom_call.1} parent=15 // pred_check_branch
          %173 = sbr.rel (%p171) target = $region24
        $region23: #{tpu_custom_call.1} parent=15 // pred_region
          %s174 = sand.u32 %s18, 1
          %s175 = scalar_lea.sflag [#allocation7], %s174
          %s176 = sand.u32 %s66, 1
          %s177 = smul.addr %s176, 256
          %s178 = scalar_lea.vmem [#allocation6], %s177
          %s179 = smul.u32 2, %s26
          %s181 = ssub.s32 4096, 4096
          %182 = vsyncadd %s175, %s181
          %s183 = smul.addr %s179, 128
          %s184 = scalar_lea.hbm %s1, %s183
          %s185 = sshll.u32 %s178, 4
          %s186 = int_to_ptr.vmem [resolvable:$true] %s185
          %191 = dma.hbm_to_vmem [thread:$0]  %s184, 4096, %s186, %s175, 512, 256, 16
        $region24: #{tpu_custom_call.1} parent=15 // pred_fallthru
          _
        // Predicated region
        $region25: #{tpu_custom_call.1} parent=15 // pred_check
          %p192 = pneg %p102
        $region26: #{tpu_custom_call.1} parent=15 // pred_check_branch
          %194 = sbr.rel (%p192) target = $region28
        $region27: #{tpu_custom_call.1} parent=15 // pred_region
          %s195 = sand.u32 %s18, 1
          %s196 = scalar_lea.sflag [#allocation7], %s195
          %s197 = sand.u32 %s92, 1
          %s198 = smul.addr %s197, 128
          %s199 = scalar_lea.vmem [#allocation8], %s198
          %s200 = smul.u32 16, %s26
          %s202 = ssub.s32 2048, 2048
          %203 = vsyncadd %s196, %s202
          %s204 = smul.addr %s200, 128
          %s205 = scalar_lea.hbm %s2, %s204
          %s206 = sshll.u32 %s199, 4
          %s207 = int_to_ptr.vmem [resolvable:$true] %s206
          %212 = dma.hbm_to_vmem [thread:$0]  %s205, 2048, %s207, %s196, 128, 128, 8
        $region28: #{tpu_custom_call.1} parent=15 // pred_fallthru
          _
      $region16: #{tpu_custom_call.1} parent=5 // pred_fallthru
        _
      %p213 = scmp.le.s32.totalorder 1, %s18
      %p214 = scmp.lt.s32.totalorder %s18, 5
      %p215 = pnand %p213, %p214
      %p216 = pneg %p215
      // Predicated region
      $region29: #{tpu_custom_call.1} parent=5 // pred_check
        _
      $region30: #{tpu_custom_call.1} parent=5 // pred_check_branch
        %218 = sbr.rel (%p215) target = $region32
      $region31: #{tpu_custom_call.1} parent=5 // pred_region
        %s219 = ssub.s32 %s18, 1
        %s220 = sand.u32 %s43, 1
        %s221 = scalar_lea.sflag [#allocation4], %s220
        %s222 = sand.u32 %s43, 1
        %s223 = smul.addr %s222, 8
        %s224 = scalar_lea.vmem [#allocation3], %s223
        // Predicated region
        $region33: #{tpu_custom_call.1} parent=31 // pred_check
          %p225 = pneg %p56
        $region34: #{tpu_custom_call.1} parent=31 // pred_check_branch
          %227 = sbr.rel (%p225) target = $region36
        $region35: #{tpu_custom_call.1} parent=31 // pred_region
          %228 = dma.done %s221, 128
        $region36: #{tpu_custom_call.1} parent=31 // pred_fallthru
          _
        %s229 = sand.u32 %s23, 1
        %s230 = scalar_lea.sflag [#allocation7], %s229
        %s231 = sand.u32 %s69, 1
        %s232 = smul.addr %s231, 256
        %s233 = scalar_lea.vmem [#allocation6], %s232
        // Predicated region
        $region37: #{tpu_custom_call.1} parent=31 // pred_check
          %p234 = pneg %p82
        $region38: #{tpu_custom_call.1} parent=31 // pred_check_branch
          %236 = sbr.rel (%p234) target = $region40
        $region39: #{tpu_custom_call.1} parent=31 // pred_region
          %237 = dma.done %s230, 4096
        $region40: #{tpu_custom_call.1} parent=31 // pred_fallthru
          _
        %s238 = sand.u32 %s23, 1
        %s239 = scalar_lea.sflag [#allocation7], %s238
        %s240 = sand.u32 %s95, 1
        %s241 = smul.addr %s240, 128
        %s242 = scalar_lea.vmem [#allocation8], %s241
        // Predicated region
        $region41: #{tpu_custom_call.1} parent=31 // pred_check
          %p243 = pneg %p108
        $region42: #{tpu_custom_call.1} parent=31 // pred_check_branch
          %245 = sbr.rel (%p243) target = $region44
        $region43: #{tpu_custom_call.1} parent=31 // pred_region
          %246 = dma.done %s239, 2048
        $region44: #{tpu_custom_call.1} parent=31 // pred_fallthru
          _
        %s247 = sand.u32 %s43, 1
        %s248 = scalar_lea.sflag [#allocation4], %s247
        %s249 = sand.u32 %s43, 1
        %s250 = smul.addr %s249, 8
        %s251 = scalar_lea.vmem [#allocation3], %s250
        %p252 = pneg %p56
        %p253 = pneg %p53
        %s254 = sand.u32 %s23, 1
        %s255 = scalar_lea.sflag [#allocation7], %s254
        %s256 = sand.u32 %s69, 1
        %s257 = smul.addr %s256, 256
        %s258 = scalar_lea.vmem [#allocation6], %s257
        %p259 = pneg %p82
        %p260 = pneg %p79
        %s261 = sand.u32 %s23, 1
        %s262 = scalar_lea.sflag [#allocation7], %s261
        %s263 = sand.u32 %s95, 1
        %s264 = smul.addr %s263, 128
        %s265 = scalar_lea.vmem [#allocation8], %s264
        %p266 = pneg %p108
        %p267 = pneg %p105
        %p268 = pneg %p134
        %p269 = pneg %p131
        %s270 = sand.u32 %s121, 1
        %s271 = scalar_lea.sflag [#allocation5], %s270
        %s272 = sand.u32 %s121, 1
        %s273 = smul.addr %s272, 8
        %s274 = scalar_lea.vmem [#allocation9], %s273
        %s275 = smul.u32 2, %s28
        %s276 = smul.u32 16, %s28
        %v277 = vld [vmem:[%s224] sm:$0xff]
        %v278 = vld [vmem:[%s233] sm:$0xff]
        %v279 = vld [vmem:[%s233 + $0x8] sm:$0xff]
        %v280 = vld [vmem:[%s233 + $0x10] sm:$0xff]
        %v281 = vld [vmem:[%s233 + $0x18] sm:$0xff]
        %v282 = vld [vmem:[%s233 + $0x20] sm:$0xff]
        %v283 = vld [vmem:[%s233 + $0x28] sm:$0xff]
        %v284 = vld [vmem:[%s233 + $0x30] sm:$0xff]
        %v285 = vld [vmem:[%s233 + $0x38] sm:$0xff]
        %v286 = vld [vmem:[%s233 + $0x40] sm:$0xff]
        %v287 = vld [vmem:[%s233 + $0x48] sm:$0xff]
        %v288 = vld [vmem:[%s233 + $0x50] sm:$0xff]
        %v289 = vld [vmem:[%s233 + $0x58] sm:$0xff]
        %v290 = vld [vmem:[%s233 + $0x60] sm:$0xff]
        %v291 = vld [vmem:[%s233 + $0x68] sm:$0xff]
        %v292 = vld [vmem:[%s233 + $0x70] sm:$0xff]
        %v293 = vld [vmem:[%s233 + $0x78] sm:$0xff]
        %v294 = vld [vmem:[%s233 + $0x80] sm:$0xff]
        %v295 = vld [vmem:[%s233 + $0x88] sm:$0xff]
        %v296 = vld [vmem:[%s233 + $0x90] sm:$0xff]
        %v297 = vld [vmem:[%s233 + $0x98] sm:$0xff]
        %v298 = vld [vmem:[%s233 + $0xa0] sm:$0xff]
        %v299 = vld [vmem:[%s233 + $0xa8] sm:$0xff]
        %v300 = vld [vmem:[%s233 + $0xb0] sm:$0xff]
        %v301 = vld [vmem:[%s233 + $0xb8] sm:$0xff]
        %v302 = vld [vmem:[%s233 + $0xc0] sm:$0xff]
        %v303 = vld [vmem:[%s233 + $0xc8] sm:$0xff]
        %v304 = vld [vmem:[%s233 + $0xd0] sm:$0xff]
        %v305 = vld [vmem:[%s233 + $0xd8] sm:$0xff]
        %v306 = vld [vmem:[%s233 + $0xe0] sm:$0xff]
        %v307 = vld [vmem:[%s233 + $0xe8] sm:$0xff]
        %v308 = vld [vmem:[%s233 + $0xf0] sm:$0xff]
        %v309 = vld [vmem:[%s233 + $0xf8] sm:$0xff]
        %310 = vmatprep.subr.mxu0 %v279
        %311 = vmatpush1.msra.mxu0 %v278
        %312 = vmatprep.subr.mxu0 %v281
        %313 = vmatpush1.msra.mxu0 %v280
        %314 = vmatprep.subr.mxu0 %v283
        %315 = vmatpush1.msra.mxu0 %v282
        %316 = vmatprep.subr.mxu0 %v285
        %317 = vmatpush1.msra.mxu0 %v284
        %318 = vmatprep.subr.mxu0 %v287
        %319 = vmatpush1.msra.mxu0 %v286
        %320 = vmatprep.subr.mxu0 %v289
        %321 = vmatpush1.msra.mxu0 %v288
        %322 = vmatprep.subr.mxu0 %v291
        %323 = vmatpush1.msra.mxu0 %v290
        %324 = vmatprep.subr.mxu0 %v293
        %325 = vmatpush1.msra.mxu0 %v292
        %326 = vmatprep.subr.mxu0 %v295
        %327 = vmatpush1.msra.mxu0 %v294
        %328 = vmatprep.subr.mxu0 %v297
        %329 = vmatpush1.msra.mxu0 %v296
        %330 = vmatprep.subr.mxu0 %v299
        %331 = vmatpush1.msra.mxu0 %v298
        %332 = vmatprep.subr.mxu0 %v301
        %333 = vmatpush1.msra.mxu0 %v300
        %334 = vmatprep.subr.mxu0 %v303
        %335 = vmatpush1.msra.mxu0 %v302
        %336 = vmatprep.subr.mxu0 %v305
        %337 = vmatpush1.msra.mxu0 %v304
        %338 = vmatprep.subr.mxu0 %v307
        %339 = vmatpush1.msra.mxu0 %v306
        %340 = vmatprep.subr.mxu0 %v309
        %341 = vmatpush1.msra.mxu0 %v308
        %342 = vmatprep.subr.mxu0 0.0
        %343 = vmatpush1.msra.mxu0 0.0
        %344 = vmatprep.subr.mxu0 0.0
        %345 = vmatpush1.msra.mxu0 0.0
        %346 = vmatprep.subr.mxu0 0.0
        %347 = vmatpush1.msra.mxu0 0.0
        %348 = vmatprep.subr.mxu0 0.0
        %349 = vmatpush1.msra.mxu0 0.0
        %350 = vmatprep.subr.mxu0 0.0
        %351 = vmatpush1.msra.mxu0 0.0
        %352 = vmatprep.subr.mxu0 0.0
        %353 = vmatpush1.msra.mxu0 0.0
        %354 = vmatprep.subr.mxu0 0.0
        %355 = vmatpush1.msra.mxu0 0.0
        %356 = vmatprep.subr.mxu0 0.0
        %357 = vmatpush1.msra.mxu0 0.0
        %358 = vmatprep.subr.mxu0 0.0
        %359 = vmatpush1.msra.mxu0 0.0
        %360 = vmatprep.subr.mxu0 0.0
        %361 = vmatpush1.msra.mxu0 0.0
        %362 = vmatprep.subr.mxu0 0.0
        %363 = vmatpush1.msra.mxu0 0.0
        %364 = vmatprep.subr.mxu0 0.0
        %365 = vmatpush1.msra.mxu0 0.0
        %366 = vmatprep.subr.mxu0 0.0
        %367 = vmatpush1.msra.mxu0 0.0
        %368 = vmatprep.subr.mxu0 0.0
        %369 = vmatpush1.msra.mxu0 0.0
        %370 = vmatprep.subr.mxu0 0.0
        %371 = vmatpush1.msra.mxu0 0.0
        %372 = vmatprep.subr.mxu0 0.0
        %373 = vmatpush1.msra.mxu0 0.0
        %374 = vmatprep.mubr.f32.mxu0 0.0
        %375 = vmatmul.mubr.f32.gmra.mrb[0].mxu0 %v277
        %v376 = vpop.f32.mrb[0].mxu0
        %v377 = vadd.f32 0.0, %v376
        %v378 = vpop.f32.mrb[0].mxu0
        %v379 = vadd.f32 0.0, %v378
        %380 = vdwg.mxu0
        %v381 = vmul.f32 %v377, 0.5
        %v382 = vmul.f32 %v377, 0.044715
        %v383 = vmul.f32 %v382, %v377
        %v384 = vmul.f32 %v383, %v377
        %v385 = vadd.f32 %v377, %v384
        %v386 = vmul.f32 %v385, 0.7978846
        %v387 = vtanh.pop %v386
        %v388 = vadd.f32 %v387, 1.0
        %v389 = vmul.f32 %v381, %v388
        %v390 = vmul.f32 %v389, %v379
        %v391 = vld [vmem:[%s242] sm:$0xff]
        %v392 = vld [vmem:[%s242 + $0x8] sm:$0xff]
        %v393 = vld [vmem:[%s242 + $0x10] sm:$0xff]
        %v394 = vld [vmem:[%s242 + $0x18] sm:$0xff]
        %v395 = vld [vmem:[%s242 + $0x20] sm:$0xff]
        %v396 = vld [vmem:[%s242 + $0x28] sm:$0xff]
        %v397 = vld [vmem:[%s242 + $0x30] sm:$0xff]
        %v398 = vld [vmem:[%s242 + $0x38] sm:$0xff]
        %v399 = vld [vmem:[%s242 + $0x40] sm:$0xff]
        %v400 = vld [vmem:[%s242 + $0x48] sm:$0xff]
        %v401 = vld [vmem:[%s242 + $0x50] sm:$0xff]
        %v402 = vld [vmem:[%s242 + $0x58] sm:$0xff]
        %v403 = vld [vmem:[%s242 + $0x60] sm:$0xff]
        %v404 = vld [vmem:[%s242 + $0x68] sm:$0xff]
        %v405 = vld [vmem:[%s242 + $0x70] sm:$0xff]
        %v406 = vld [vmem:[%s242 + $0x78] sm:$0xff]
        %407 = vmatprep.subr.mxu0 0.0
        %408 = vmatpush1.msra.mxu0 %v391
        %409 = vmatprep.subr.mxu0 0.0
        %410 = vmatpush1.msra.mxu0 %v392
        %411 = vmatprep.subr.mxu0 0.0
        %412 = vmatpush1.msra.mxu0 %v393
        %413 = vmatprep.subr.mxu0 0.0
        %414 = vmatpush1.msra.mxu0 %v394
        %415 = vmatprep.subr.mxu0 0.0
        %416 = vmatpush1.msra.mxu0 %v395
        %417 = vmatprep.subr.mxu0 0.0
        %418 = vmatpush1.msra.mxu0 %v396
        %419 = vmatprep.subr.mxu0 0.0
        %420 = vmatpush1.msra.mxu0 %v397
        %421 = vmatprep.subr.mxu0 0.0
        %422 = vmatpush1.msra.mxu0 %v398
        %423 = vmatprep.subr.mxu0 0.0
        %424 = vmatpush1.msra.mxu0 %v399
        %425 = vmatprep.subr.mxu0 0.0
        %426 = vmatpush1.msra.mxu0 %v400
        %427 = vmatprep.subr.mxu0 0.0
        %428 = vmatpush1.msra.mxu0 %v401
        %429 = vmatprep.subr.mxu0 0.0
        %430 = vmatpush1.msra.mxu0 %v402
        %431 = vmatprep.subr.mxu0 0.0
        %432 = vmatpush1.msra.mxu0 %v403
        %433 = vmatprep.subr.mxu0 0.0
        %434 = vmatpush1.msra.mxu0 %v404
        %435 = vmatprep.subr.mxu0 0.0
        %436 = vmatpush1.msra.mxu0 %v405
        %437 = vmatprep.subr.mxu0 0.0
        %438 = vmatpush1.msra.mxu0 %v406
        %439 = vmatprep.subr.mxu0 0.0
        %440 = vmatpush1.msra.mxu0 0.0
        %441 = vmatprep.subr.mxu0 0.0
        %442 = vmatpush1.msra.mxu0 0.0
        %443 = vmatprep.subr.mxu0 0.0
        %444 = vmatpush1.msra.mxu0 0.0
        %445 = vmatprep.subr.mxu0 0.0
        %446 = vmatpush1.msra.mxu0 0.0
        %447 = vmatprep.subr.mxu0 0.0
        %448 = vmatpush1.msra.mxu0 0.0
        %449 = vmatprep.subr.mxu0 0.0
        %450 = vmatpush1.msra.mxu0 0.0
        %451 = vmatprep.subr.mxu0 0.0
        %452 = vmatpush1.msra.mxu0 0.0
        %453 = vmatprep.subr.mxu0 0.0
        %454 = vmatpush1.msra.mxu0 0.0
        %455 = vmatprep.subr.mxu0 0.0
        %456 = vmatpush1.msra.mxu0 0.0
        %457 = vmatprep.subr.mxu0 0.0
        %458 = vmatpush1.msra.mxu0 0.0
        %459 = vmatprep.subr.mxu0 0.0
        %460 = vmatpush1.msra.mxu0 0.0
        %461 = vmatprep.subr.mxu0 0.0
        %462 = vmatpush1.msra.mxu0 0.0
        %463 = vmatprep.subr.mxu0 0.0
        %464 = vmatpush1.msra.mxu0 0.0
        %465 = vmatprep.subr.mxu0 0.0
        %466 = vmatpush1.msra.mxu0 0.0
        %467 = vmatprep.subr.mxu0 0.0
        %468 = vmatpush1.msra.mxu0 0.0
        %469 = vmatprep.subr.mxu0 0.0
        %470 = vmatpush1.msra.mxu0 0.0
        %471 = vmatprep.mubr.f32.mxu0 0.0
        %472 = vmatmul.mubr.f32.gmra.mrb[0].mxu0 %v390
        %v473 = vpop.f32.mrb[0].mxu0
        %v474 = vadd.f32 0.0, %v473
        %v475 = vpop.f32.mrb[0].mxu0
        %476 = vdwg.mxu0
        %p477 = scmp.eq.s32.totalorder %s28, 0
        // Predicated region
        $region45: #{tpu_custom_call.1} parent=31 // pred_check
          %p478 = pneg %p477
        $region46: #{tpu_custom_call.1} parent=31 // pred_check_branch
          %480 = sbr.rel (%p478) target = $region48
        $region47: #{tpu_custom_call.1} parent=31 // pred_region
          %481 = vst [vmem:[#allocation2] sm:$0xff] %v474
        $region48: #{tpu_custom_call.1} parent=31 // pred_fallthru
          _
        %p482 = scmp.gt.s32.totalorder %s28, 0
        // Predicated region
        $region49: #{tpu_custom_call.1} parent=31 // pred_check
          %p483 = pneg %p482
        $region50: #{tpu_custom_call.1} parent=31 // pred_check_branch
          %485 = sbr.rel (%p483) target = $region52
        $region51: #{tpu_custom_call.1} parent=31 // pred_region
          %v486 = vld [vmem:[#allocation2] sm:$0xff]
          %v487 = vadd.f32 %v486, %v474
          %488 = vst [vmem:[#allocation2] sm:$0xff] %v487
        $region52: #{tpu_custom_call.1} parent=31 // pred_fallthru
          _
        %p489 = scmp.eq.s32.totalorder %s28, 1
        // Predicated region
        $region53: #{tpu_custom_call.1} parent=31 // pred_check
          %p490 = pneg %p489
        $region54: #{tpu_custom_call.1} parent=31 // pred_check_branch
          %492 = sbr.rel (%p490) target = $region56
        $region55: #{tpu_custom_call.1} parent=31 // pred_region
          %v493 = vld [vmem:[#allocation2] sm:$0xff]
          %494 = vst [vmem:[%s274] sm:$0xff] %v493
        $region56: #{tpu_custom_call.1} parent=31 // pred_fallthru
          _
        %s495 = sand.u32 %s121, 1
        %s496 = scalar_lea.sflag [#allocation5], %s495
        %s497 = sand.u32 %s121, 1
        %s498 = smul.addr %s497, 8
        %s499 = scalar_lea.vmem [#allocation9], %s498
        // Predicated region
        $region57: #{tpu_custom_call.1} parent=31 // pred_check
          %p500 = pneg %p131
        $region58: #{tpu_custom_call.1} parent=31 // pred_check_branch
          %502 = sbr.rel (%p500) target = $region60
        $region59: #{tpu_custom_call.1} parent=31 // pred_region
          %s504 = ssub.s32 128, 128
          %505 = vsyncadd %s496, %s504
          %s506 = smul.addr %s27, 128
          %s507 = scalar_lea.hbm %s3, %s506
          %s509 = sshll.u32 %s499, 4
          %s510 = int_to_ptr.vmem [resolvable:$true] %s509
          %512 = dma.vmem_to_hbm [thread:$0]  %s510, 128, %s507, %s496
        $region60: #{tpu_custom_call.1} parent=31 // pred_fallthru
          _
      $region32: #{tpu_custom_call.1} parent=5 // pred_fallthru
        _
      %p513 = scmp.le.s32.totalorder 2, %s18
      // Predicated region
      $region61: #{tpu_custom_call.1} parent=5 // pred_check
        %p514 = pneg %p513
      $region62: #{tpu_custom_call.1} parent=5 // pred_check_branch
        %516 = sbr.rel (%p514) target = $region64
      $region63: #{tpu_custom_call.1} parent=5 // pred_region
        %s517 = ssub.s32 %s18, 2
        // Predicated region
        $region65: #{tpu_custom_call.1} parent=63 // pred_check
          %p518 = pneg %p137
        $region66: #{tpu_custom_call.1} parent=63 // pred_check_branch
          %520 = sbr.rel (%p518) target = $region68
        $region67: #{tpu_custom_call.1} parent=63 // pred_region
          %s521 = sand.u32 %s122, 1
          %s522 = scalar_lea.sflag [#allocation5], %s521
          %s523 = sand.u32 %s122, 1
          %s524 = smul.addr %s523, 8
          %s525 = scalar_lea.vmem [#allocation9], %s524
          %526 = dma.done %s522, 128
        $region68: #{tpu_custom_call.1} parent=63 // pred_fallthru
          _
      $region64: #{tpu_custom_call.1} parent=5 // pred_fallthru
        _
    $region6: #{tpu_custom_call.1} parent=1 // loop_footer
      %s22 = sadd.s32 1, %s18
    $region7: #{tpu_custom_call.1} parent=1 // loop_footer_branch
      %17 = sbr.rel target = $region3
    $region8: #{tpu_custom_call.1} parent=1 // loop_exit
      _
    %527 = vsyncpa [#allocation4], 1
    %s528 = scalar_lea.sflag [#allocation4], 1
    %529 = vsyncpa %s528, 1
    %530 = vsyncpa [#allocation7], 1
    %s531 = scalar_lea.sflag [#allocation7], 1
    %532 = vsyncpa %s531, 1
    %533 = vsyncpa [#allocation5], 1
    %s534 = scalar_lea.sflag [#allocation5], 1
    %535 = vsyncpa %s534, 1

</llo_original>
